<compile_context>
chip_gen: v5e
topology: v5e:2x2
jax: 0.10.0
libtpu: 0.0.40
codegen_flags: <defaults>
</compile_context>

<pallas_src>
import functools
from typing import NamedTuple

import jax
import jax.numpy as jnp
from jax.experimental import pallas as pl
from jax.experimental.pallas import tpu as pltpu

LANES = 128  # lane-dense packed slab width
_VMEM = pl.BlockSpec(memory_space=pltpu.MemorySpace.VMEM)


def _round_up(n, m):
    return (n + m - 1) // m * m


class Layout(NamedTuple):
    # feature dims per entity
    d_t: int; d_l: int; d_c: int
    # embedding / rep / common dims
    emb_n: int; emb_dim: int; rep: int; com: int
    # input-slab lane offsets
    x_t: int; x_l: int; x_c: int; x_oh: int; x_ind: int
    # packed-message lane offsets
    emb_off: int; rep_off: int; com_off: int


# --------------------------------------------------------------------------
# Fused Pallas kernel: all of JetTaggerNetwork.init_nodes in 4 matmuls.
# --------------------------------------------------------------------------
def _fused_jet_tagger_kernel(x_ref, adj_ref, w1_ref, w2_ref, w3_ref,
                             node_ref, msg_ref):
    f32 = jnp.float32
    x = x_ref[...]                                                   # (M, 128)
    # block-diagonal MLP (all three entity MLPs at once); per-entity biases and
    # the node-type one-hot ride along via indicator / pass-through lanes.
    h = jnp.maximum(jnp.dot(x, w1_ref[...], preferred_element_type=f32), 0.0)
    h = jnp.maximum(jnp.dot(h, w2_ref[...], preferred_element_type=f32), 0.0)
    # W3 folds: per-entity final Linear, its bias, and the embedding table.
    # Adding x contributes the 'common variables' at their message lanes; the
    # other nonzero x lanes (< emb_off) are never extracted, so the add is exact
    # for every lane range the wrapper slices out.
    msg = jnp.dot(h, w3_ref[...], preferred_element_type=f32) + x    # (M, 128)
    msg_ref[...] = msg
    # Single adjacency matmul == all three DGL copy_src + fn.sum aggregations
    # (node_type_embedding, node features, common variables) at once.
    node_ref[...] = jnp.dot(adj_ref[...], msg, preferred_element_type=f32)


# --------------------------------------------------------------------------
# One-time parameter packing (hoisted out of the per-call path).
# --------------------------------------------------------------------------
def pack_params(params, com_dim):
    f32 = jnp.float32
    (wt1, bt1), (wt2, bt2), (wt3, bt3) = params['track_init']
    (wl1, bl1), (wl2, bl2), (wl3, bl3) = params['lepton_init']
    (wc1, bc1), (wc2, bc2), (wc3, bc3) = params['cell_init']
    embd = params['node_type_embd']
    emb_n, emb_dim = embd.shape

    d_t, h1_t = wt1.shape
    d_l, h1_l = wl1.shape
    d_c, h1_c = wc1.shape
    h2_t, h2_l, h2_c = wt2.shape[1], wl2.shape[1], wc2.shape[1]
    rep = wt3.shape[1]
    assert wl3.shape[1] == rep and wc3.shape[1] == rep

    # input-slab lanes: [features_t | features_l | features_c | onehot | indicator]
    x_t, x_l, x_c = 0, d_t, d_t + d_l
    x_oh = d_t + d_l + d_c
    x_ind = x_oh + emb_n
    x_end = x_ind + 3
    # hidden-1 lanes
    g1_t, g1_l, g1_c = 0, h1_t, h1_t + h1_l
    g1_oh = h1_t + h1_l + h1_c
    g1_ind = g1_oh + emb_n
    g1_end = g1_ind + 3
    # hidden-2 lanes
    g2_t, g2_l, g2_c = 0, h2_t, h2_t + h2_l
    g2_oh = h2_t + h2_l + h2_c
    g2_ind = g2_oh + emb_n
    g2_end = g2_ind + 3
    # packed-message lanes (must start above x_end so the x-add cannot pollute them)
    emb_off = x_end
    rep_off = emb_off + emb_dim
    com_off = rep_off + rep
    msg_end = com_off + com_dim
    assert max(x_end, g1_end, g2_end, msg_end) <= LANES, "packed slab exceeds 128 lanes"

    lay = Layout(d_t=d_t, d_l=d_l, d_c=d_c,
                 emb_n=emb_n, emb_dim=emb_dim, rep=rep, com=com_dim,
                 x_t=x_t, x_l=x_l, x_c=x_c, x_oh=x_oh, x_ind=x_ind,
                 emb_off=emb_off, rep_off=rep_off, com_off=com_off)

    ioh = jnp.arange(emb_n)
    i3 = jnp.arange(3)

    w1 = jnp.zeros((LANES, LANES), f32)
    w1 = w1.at[x_t:x_t + d_t, g1_t:g1_t + h1_t].set(wt1)
    w1 = w1.at[x_l:x_l + d_l, g1_l:g1_l + h1_l].set(wl1)
    w1 = w1.at[x_c:x_c + d_c, g1_c:g1_c + h1_c].set(wc1)
    w1 = w1.at[x_ind + 0, g1_t:g1_t + h1_t].set(bt1[0])      # biases via indicator
    w1 = w1.at[x_ind + 1, g1_l:g1_l + h1_l].set(bl1[0])
    w1 = w1.at[x_ind + 2, g1_c:g1_c + h1_c].set(bc1[0])
    w1 = w1.at[x_oh + ioh, g1_oh + ioh].set(1.0)              # one-hot pass-through
    w1 = w1.at[x_ind + i3, g1_ind + i3].set(1.0)              # indicator pass-through

    w2 = jnp.zeros((LANES, LANES), f32)
    w2 = w2.at[g1_t:g1_t + h1_t, g2_t:g2_t + h2_t].set(wt2)
    w2 = w2.at[g1_l:g1_l + h1_l, g2_l:g2_l + h2_l].set(wl2)
    w2 = w2.at[g1_c:g1_c + h1_c, g2_c:g2_c + h2_c].set(wc2)
    w2 = w2.at[g1_ind + 0, g2_t:g2_t + h2_t].set(bt2[0])
    w2 = w2.at[g1_ind + 1, g2_l:g2_l + h2_l].set(bl2[0])
    w2 = w2.at[g1_ind + 2, g2_c:g2_c + h2_c].set(bc2[0])
    w2 = w2.at[g1_oh + ioh, g2_oh + ioh].set(1.0)
    w2 = w2.at[g1_ind + i3, g2_ind + i3].set(1.0)

    w3 = jnp.zeros((LANES, LANES), f32)
    w3 = w3.at[g2_t:g2_t + h2_t, rep_off:rep_off + rep].set(wt3)
    w3 = w3.at[g2_l:g2_l + h2_l, rep_off:rep_off + rep].set(wl3)
    w3 = w3.at[g2_c:g2_c + h2_c, rep_off:rep_off + rep].set(wc3)
    w3 = w3.at[g2_ind + 0, rep_off:rep_off + rep].set(bt3[0])
    w3 = w3.at[g2_ind + 1, rep_off:rep_off + rep].set(bl3[0])
    w3 = w3.at[g2_ind + 2, rep_off:rep_off + rep].set(bc3[0])
    w3 = w3.at[g2_oh:g2_oh + emb_n, emb_off:emb_off + emb_dim].set(embd)  # embedding folded into W3

    return {'w1': w1, 'w2': w2, 'w3': w3, 'layout': lay}


# --------------------------------------------------------------------------
# Per-call path (data packing + fused kernel), jitted; layout is static.
# --------------------------------------------------------------------------
@functools.partial(jax.jit, static_argnums=0)
def _forward_impl(lay, w1p, w2p, w3p,
                  track_vars, lep_vars, cell_vars,
                  track_common, lep_common,
                  t_type, l_type, c_type,
                  adj_t, adj_l, adj_c):
    f32 = jnp.float32
    n_t, n_l, n_c = track_vars.shape[0], lep_vars.shape[0], cell_vars.shape[0]
    n_nodes = adj_t.shape[0]
    n_t_p, n_l_p, n_c_p = _round_up(n_t, 8), _round_up(n_l, 8), _round_up(n_c, 8)
    r_t, r_l, r_c = 0, n_t_p, n_t_p + n_l_p
    M = n_t_p + n_l_p + n_c_p
    N_p = _round_up(n_nodes, 8)

    # --- pack the single (M, 128) input slab --------------------------------
    x = jnp.zeros((M, LANES), f32)
    x = x.at[r_t:r_t + n_t, lay.x_t:lay.x_t + lay.d_t].set(track_vars.astype(f32))
    x = x.at[r_l:r_l + n_l, lay.x_l:lay.x_l + lay.d_l].set(lep_vars.astype(f32))
    x = x.at[r_c:r_c + n_c, lay.x_c:lay.x_c + lay.d_c].set(cell_vars.astype(f32))
    # common variables pre-placed at the message common lanes (cells contribute none)
    x = x.at[r_t:r_t + n_t, lay.com_off:lay.com_off + lay.com].set(track_common.astype(f32))
    x = x.at[r_l:r_l + n_l, lay.com_off:lay.com_off + lay.com].set(lep_common.astype(f32))
    # node-type one-hot (embedding lookup happens inside the final W3 matmul).
    # TODO(synk): out-of-range ids give a zero embedding instead of torch's error.
    x = x.at[r_t:r_t + n_t, lay.x_oh:lay.x_oh + lay.emb_n].set(
        jax.nn.one_hot(t_type, lay.emb_n, dtype=f32))
    x = x.at[r_l:r_l + n_l, lay.x_oh:lay.x_oh + lay.emb_n].set(
        jax.nn.one_hot(l_type, lay.emb_n, dtype=f32))
    x = x.at[r_c:r_c + n_c, lay.x_oh:lay.x_oh + lay.emb_n].set(
        jax.nn.one_hot(c_type, lay.emb_n, dtype=f32))
    # entity indicator lanes (carry per-entity biases through the block-diag matmuls;
    # pad rows keep indicator 0 -> exactly zero messages)
    x = x.at[r_t:r_t + n_t, lay.x_ind + 0].set(1.0)
    x = x.at[r_l:r_l + n_l, lay.x_ind + 1].set(1.0)
    x = x.at[r_c:r_c + n_c, lay.x_ind + 2].set(1.0)

    # --- pack the single column-concatenated adjacency ----------------------
    adj = jnp.zeros((N_p, M), f32)
    adj = adj.at[:n_nodes, r_t:r_t + n_t].set(adj_t.astype(f32))
    adj = adj.at[:n_nodes, r_l:r_l + n_l].set(adj_l.astype(f32))
    adj = adj.at[:n_nodes, r_c:r_c + n_c].set(adj_c.astype(f32))

    flops = 2 * M * LANES * LANES * 3 + 2 * N_p * M * LANES
    bytes_accessed = 4 * (x.size + adj.size + 3 * LANES * LANES + (N_p + M) * LANES)

    node_slab, msg_slab = pl.pallas_call(
        _fused_jet_tagger_kernel,
        out_shape=(jax.ShapeDtypeStruct((N_p, LANES), f32),
                   jax.ShapeDtypeStruct((M, LANES), f32)),
        in_specs=[_VMEM] * 5,
        out_specs=(_VMEM, _VMEM),
        cost_estimate=pl.CostEstimate(flops=int(flops), transcendentals=0,
                                      bytes_accessed=int(bytes_accessed)),
    )(x, adj, w1p, w2p, w3p)

    msg_t = msg_slab[r_t:r_t + n_t]
    msg_l = msg_slab[r_l:r_l + n_l]
    msg_c = msg_slab[r_c:r_c + n_c]
    res = {
        'node_type_embedding': node_slab[:n_nodes, lay.emb_off:lay.emb_off + lay.emb_dim],
        'node_features':       node_slab[:n_nodes, lay.rep_off:lay.rep_off + lay.rep],
        'common_variables':    node_slab[:n_nodes, lay.com_off:lay.com_off + lay.com],
        'track_rep':  msg_t[:, lay.rep_off:lay.rep_off + lay.rep],
        'lepton_rep': msg_l[:, lay.rep_off:lay.rep_off + lay.rep],
        'cell_rep':   msg_c[:, lay.rep_off:lay.rep_off + lay.rep],
        'track_node_type_embedding':  msg_t[:, lay.emb_off:lay.emb_off + lay.emb_dim],
        'lepton_node_type_embedding': msg_l[:, lay.emb_off:lay.emb_off + lay.emb_dim],
        'cell_node_type_embedding':   msg_c[:, lay.emb_off:lay.emb_off + lay.emb_dim],
    }
    return res


# --------------------------------------------------------------------------
# JetTaggerNetwork.forward  (init_nodes part; vertex finder / classifier TODO)
# --------------------------------------------------------------------------
def jet_tagger_forward(packed, g):
    """Returns (out, g_updated) like the PyTorch forward()."""
    g_out = dict(g)
    n_nodes = g['adj_tracks'].shape[0]
    n_src = (g['track_variables'].shape[0] + g['lep_variables'].shape[0]
             + g['cell_variables'].shape[0])
    if n_nodes == 0 or n_src == 0:
        # TODO(synk): self.jet_classifier(g) -- JetClassifier not provided.
        return None, g_out

    res = _forward_impl(
        packed['layout'], packed['w1'], packed['w2'], packed['w3'],
        g['track_variables'], g['lep_variables'], g['cell_variables'],
        g['track_common'], g['lep_common'],
        g['track_node_type'], g['lepton_node_type'], g['cell_node_type'],
        g['adj_tracks'], g['adj_leptons'], g['adj_cells'])
    g_out.update(res)

    # TODO(synk): self.vertex_finder(g) -- VertexFindingModel not provided.
    # TODO(synk): self.jet_classifier(g) -- JetClassifier not provided ('train classifier' False).
    out = None
    return out, g_out


# --------------------------------------------------------------------------
# Parameter construction (mirrors build_layers / nn.Embedding defaults)
# --------------------------------------------------------------------------
def init_linear(key, in_dim, out_dim):
    """PyTorch nn.Linear default init; weight stored (in, out) so forward is x @ W + b."""
    kw, kb = jax.random.split(key)
    bound = 1.0 / jnp.sqrt(in_dim)
    w = jax.random.uniform(kw, (in_dim, out_dim), jnp.float32, -bound, bound)
    b = jax.random.uniform(kb, (1, out_dim), jnp.float32, -bound, bound)
    return w, b


def init_mlp(key, inputsize, layers, outputsize):
    dims = [inputsize] + list(layers) + [outputsize]
    keys = jax.random.split(key, len(dims) - 1)
    return [init_linear(k, dims[i], dims[i + 1]) for i, k in enumerate(keys)]


# --------------------------------------------------------------------------
# Pure-JAX reference (for correctness check of the fused Pallas kernel)
# --------------------------------------------------------------------------
def _ref_mlp3(x, params):
    (w1, b1), (w2, b2), (w3, b3) = params
    h = jnp.maximum(x @ w1 + b1, 0.0)
    h = jnp.maximum(h @ w2 + b2, 0.0)
    return h @ w3 + b3


def _ref_forward(params, g):
    emb = params['node_type_embd']
    emb_t = emb[g['track_node_type']]
    emb_l = emb[g['lepton_node_type']]
    emb_c = emb[g['cell_node_type']]
    nte = g['adj_tracks'] @ emb_t + g['adj_leptons'] @ emb_l + g['adj_cells'] @ emb_c
    tr = _ref_mlp3(g['track_variables'], params['track_init'])
    lr = _ref_mlp3(g['lep_variables'], params['lepton_init'])
    cr = _ref_mlp3(g['cell_variables'], params['cell_init'])
    nf = g['adj_tracks'] @ tr + g['adj_leptons'] @ lr + g['adj_cells'] @ cr
    cv = g['adj_tracks'] @ g['track_common'] + g['adj_leptons'] @ g['lep_common']
    return nte, nf, cv, tr, lr, cr


# --------------------------------------------------------------------------
# Main
# --------------------------------------------------------------------------
if __name__ == "__main__":
    key = jax.random.PRNGKey(0)
    n_tracks, n_leptons, n_cells, n_nodes = 8, 4, 16, 8

    k = jax.random.split(key, 16)
    params = {
        'track_init':  init_mlp(k[0], 16, [32, 32], 24),
        'lepton_init': init_mlp(k[1], 12, [32, 32], 24),
        'cell_init':   init_mlp(k[2], 8,  [32, 32], 24),
        # nn.Embedding(5, 5) default init: N(0, 1)
        'node_type_embd': jax.random.normal(k[3], (5, 5), jnp.float32),
    }

    # Synthetic graph: dense adjacency (num_nodes, num_src) with 0/1 entries
    def make_adj(kk, n_src):
        tgt = jax.random.randint(kk, (n_src,), 0, n_nodes)
        return jnp.zeros((n_nodes, n_src), jnp.float32).at[tgt, jnp.arange(n_src)].set(1.0)

    g = {
        'track_variables':  jax.random.normal(k[4], (n_tracks, 16), jnp.float32),
        'lep_variables':    jax.random.normal(k[5], (n_leptons, 12), jnp.float32),
        'cell_variables':   jax.random.normal(k[6], (n_cells, 8), jnp.float32),
        'track_common':     jax.random.normal(k[7], (n_tracks, 6), jnp.float32),
        'lep_common':       jax.random.normal(k[8], (n_leptons, 6), jnp.float32),
        'track_node_type':  jnp.zeros((n_tracks,), jnp.int32),
        'lepton_node_type': jnp.ones((n_leptons,), jnp.int32),
        'cell_node_type':   jnp.full((n_cells,), 2, jnp.int32),
        'adj_tracks':       make_adj(k[9], n_tracks),
        'adj_leptons':      make_adj(k[10], n_leptons),
        'adj_cells':        make_adj(k[11], n_cells),
    }

    # One-time parameter packing (hoisted out of the per-call path).
    packed = pack_params(params, com_dim=g['track_common'].shape[1])

    out, g_out = jet_tagger_forward(packed, g)
    jax.block_until_ready(g_out['node_features'])

    # Correctness check against a pure-JAX reference
    ref_nte, ref_nf, ref_cv, ref_tr, ref_lr, ref_cr = _ref_forward(params, g)
    assert out is None
    tol = dict(rtol=1e-3, atol=1e-3)
    assert jnp.allclose(g_out['node_type_embedding'], ref_nte, **tol)
    assert jnp.allclose(g_out['node_features'], ref_nf, **tol)
    assert jnp.allclose(g_out['common_variables'], ref_cv, **tol)
    assert jnp.allclose(g_out['track_rep'], ref_tr, **tol)
    assert jnp.allclose(g_out['lepton_rep'], ref_lr, **tol)
    assert jnp.allclose(g_out['cell_rep'], ref_cr, **tol)
    assert jnp.allclose(g_out['track_node_type_embedding'],
                        params['node_type_embd'][g['track_node_type']], **tol)
    assert jnp.allclose(g_out['cell_node_type_embedding'],
                        params['node_type_embd'][g['cell_node_type']], **tol)

    print("KERNEL_OK")
</pallas_src>

<mosaic_0001>
module attributes {stable_mosaic.version = 11 : i64} {
  func.func @_fused_jet_tagger_kernel(%arg0: memref<32x128xf32, #tpu.memory_space<vmem>>, %arg1: memref<8x32xf32, #tpu.memory_space<vmem>>, %arg2: memref<128x128xf32, #tpu.memory_space<vmem>>, %arg3: memref<128x128xf32, #tpu.memory_space<vmem>>, %arg4: memref<128x128xf32, #tpu.memory_space<vmem>>, %arg5: memref<8x128xf32, #tpu.memory_space<vmem>>, %arg6: memref<32x128xf32, #tpu.memory_space<vmem>>) attributes {dimension_semantics = [], scalar_prefetch = 0 : i64, scratch_operands = 0 : i64, tpu.core_type = #tpu.core_type<tc>} {
    %c0 = arith.constant 0 : index
    %c0_0 = arith.constant 0 : index
    %0 = vector.load %arg0[%c0, %c0_0] : memref<32x128xf32, #tpu.memory_space<vmem>>, vector<32x128xf32>
    %c0_1 = arith.constant 0 : index
    %c0_2 = arith.constant 0 : index
    %1 = vector.load %arg2[%c0_1, %c0_2] : memref<128x128xf32, #tpu.memory_space<vmem>>, vector<128x128xf32>
    %cst = arith.constant dense<0.000000e+00> : vector<32x128xf32>
    %2 = tpu.matmul %0, %1, %cst {dimension_numbers = #tpu.dot_dimension_numbers<[1], [0], [0], [1], [0, 0, 1, 1], [], []>} : vector<32x128xf32>, vector<128x128xf32>, vector<32x128xf32> -> vector<32x128xf32>
    %cst_3 = arith.constant 0.000000e+00 : f32
    %3 = vector.broadcast %cst_3 : f32 to vector<32x128xf32>
    %4 = arith.maximumf %2, %3 : vector<32x128xf32>
    %c0_4 = arith.constant 0 : index
    %c0_5 = arith.constant 0 : index
    %5 = vector.load %arg3[%c0_4, %c0_5] : memref<128x128xf32, #tpu.memory_space<vmem>>, vector<128x128xf32>
    %cst_6 = arith.constant dense<0.000000e+00> : vector<32x128xf32>
    %6 = tpu.matmul %4, %5, %cst_6 {dimension_numbers = #tpu.dot_dimension_numbers<[1], [0], [0], [1], [0, 0, 1, 1], [], []>} : vector<32x128xf32>, vector<128x128xf32>, vector<32x128xf32> -> vector<32x128xf32>
    %cst_7 = arith.constant 0.000000e+00 : f32
    %7 = vector.broadcast %cst_7 : f32 to vector<32x128xf32>
    %8 = arith.maximumf %6, %7 : vector<32x128xf32>
    %c0_8 = arith.constant 0 : index
    %c0_9 = arith.constant 0 : index
    %9 = vector.load %arg4[%c0_8, %c0_9] : memref<128x128xf32, #tpu.memory_space<vmem>>, vector<128x128xf32>
    %cst_10 = arith.constant dense<0.000000e+00> : vector<32x128xf32>
    %10 = tpu.matmul %8, %9, %cst_10 {dimension_numbers = #tpu.dot_dimension_numbers<[1], [0], [0], [1], [0, 0, 1, 1], [], []>} : vector<32x128xf32>, vector<128x128xf32>, vector<32x128xf32> -> vector<32x128xf32>
    %11 = arith.addf %10, %0 : vector<32x128xf32>
    %c0_11 = arith.constant 0 : index
    %c0_12 = arith.constant 0 : index
    %12 = vector.load %arg6[%c0_11, %c0_12] : memref<32x128xf32, #tpu.memory_space<vmem>>, vector<32x128xf32>
    tpu.vector_store %arg6[%c0_11, %c0_12], %11 {strides = array<i32>} : memref<32x128xf32, #tpu.memory_space<vmem>>, vector<32x128xf32>,
    %c0_13 = arith.constant 0 : index
    %c0_14 = arith.constant 0 : index
    %13 = vector.load %arg1[%c0_13, %c0_14] : memref<8x32xf32, #tpu.memory_space<vmem>>, vector<8x32xf32>
    %cst_15 = arith.constant dense<0.000000e+00> : vector<8x128xf32>
    %14 = tpu.matmul %13, %11, %cst_15 {dimension_numbers = #tpu.dot_dimension_numbers<[1], [0], [0], [1], [0, 0, 1, 1], [], []>} : vector<8x32xf32>, vector<32x128xf32>, vector<8x128xf32> -> vector<8x128xf32>
    %c0_16 = arith.constant 0 : index
    %c0_17 = arith.constant 0 : index
    %15 = vector.load %arg5[%c0_16, %c0_17] : memref<8x128xf32, #tpu.memory_space<vmem>>, vector<8x128xf32>
    tpu.vector_store %arg5[%c0_16, %c0_17], %14 {strides = array<i32>} : memref<8x128xf32, #tpu.memory_space<vmem>>, vector<8x128xf32>,
    return
  }
}

</mosaic_0001>

<llo_original>
// kernel: _forward_impl.1
$region0: #{_forward_impl.1}
  #allocation0 [shape = 'u32[]', space=smem, size = 0x4, offset = 0x4, fixed_abs, tag = 'smem constant byte address 0x4 - core index']
  #allocation1 [shape = 'u32[72,128]{1,0:T(1,128)}', space=vmem, size = 0x9000, scoped, tag = 'internal scratch']
  %s0 = inlined_call_operand.vmem [shape: f32[32,128], index: 0, kind: input, shape index: {}]
  %s1 = inlined_call_operand.vmem [shape: f32[8,32], index: 1, kind: input, shape index: {}]
  %s2 = inlined_call_operand.vmem [shape: f32[128,128], index: 2, kind: input, shape index: {}]
  %s3 = inlined_call_operand.vmem [shape: f32[128,128], index: 3, kind: input, shape index: {}]
  %s4 = inlined_call_operand.vmem [shape: f32[128,128], index: 4, kind: input, shape index: {}]
  %s5 = inlined_call_operand.vmem [shape: f32[8,128], index: 5, kind: output, shape index: {0}]
  %s6 = inlined_call_operand.vmem [shape: f32[32,128], index: 6, kind: output, shape index: {1}]
  %7 = xla_tuple %s5, %s6
  %s8 = sld [smem:[#allocation0]]
  $region38: #{_forward_impl.1} parent=0
    _
  %s10 = ssub.s32 1, %s8
  %s11 = scalar_select 0, %s10, %s8
  // Predicated region
  $region2: #{_forward_impl.1} parent=0 // pred_check
    _
  $region3: #{_forward_impl.1} parent=0 // pred_check_branch
    %13 = sbr.rel (0) target = $region5
  $region4: #{_forward_impl.1} parent=0 // pred_region
    _
  $region5: #{_forward_impl.1} parent=0 // pred_fallthru
    _
  // Predicated region
  $region6: #{_forward_impl.1} parent=0 // pred_check
    _
  $region7: #{_forward_impl.1} parent=0 // pred_check_branch
    %15 = sbr.rel (0) target = $region9
  $region8: #{_forward_impl.1} parent=0 // pred_region
    _
  $region9: #{_forward_impl.1} parent=0 // pred_fallthru
    _
  // Predicated region
  $region10: #{_forward_impl.1} parent=0 // pred_check
    _
  $region11: #{_forward_impl.1} parent=0 // pred_check_branch
    %17 = sbr.rel (0) target = $region13
  $region12: #{_forward_impl.1} parent=0 // pred_region
    _
  $region13: #{_forward_impl.1} parent=0 // pred_fallthru
    _
  // Predicated region
  $region14: #{_forward_impl.1} parent=0 // pred_check
    _
  $region15: #{_forward_impl.1} parent=0 // pred_check_branch
    %19 = sbr.rel (0) target = $region17
  $region16: #{_forward_impl.1} parent=0 // pred_region
    _
  $region17: #{_forward_impl.1} parent=0 // pred_fallthru
    _
  // Predicated region
  $region18: #{_forward_impl.1} parent=0 // pred_check
    _
  $region19: #{_forward_impl.1} parent=0 // pred_check_branch
    %21 = sbr.rel (0) target = $region21
  $region20: #{_forward_impl.1} parent=0 // pred_region
    _
  $region21: #{_forward_impl.1} parent=0 // pred_fallthru
    _
  %v22 = vld [vmem:[%s0] sm:$0xff]
  %v23 = vld [vmem:[%s0 + $0x8] sm:$0xff]
  %v24 = vld [vmem:[%s0 + $0x10] sm:$0xff]
  %v25 = vld [vmem:[%s0 + $0x18] sm:$0xff]
  %v26 = vld [vmem:[%s2] sm:$0xff]
  %v27 = vld [vmem:[%s2 + $0x8] sm:$0xff]
  %v28 = vld [vmem:[%s2 + $0x10] sm:$0xff]
  %v29 = vld [vmem:[%s2 + $0x18] sm:$0xff]
  %v30 = vld [vmem:[%s2 + $0x20] sm:$0xff]
  %v31 = vld [vmem:[%s2 + $0x28] sm:$0xff]
  %v32 = vld [vmem:[%s2 + $0x30] sm:$0xff]
  %v33 = vld [vmem:[%s2 + $0x38] sm:$0xff]
  %v34 = vld [vmem:[%s2 + $0x40] sm:$0xff]
  %v35 = vld [vmem:[%s2 + $0x48] sm:$0xff]
  %v36 = vld [vmem:[%s2 + $0x50] sm:$0xff]
  %v37 = vld [vmem:[%s2 + $0x58] sm:$0xff]
  %v38 = vld [vmem:[%s2 + $0x60] sm:$0xff]
  %v39 = vld [vmem:[%s2 + $0x68] sm:$0xff]
  %v40 = vld [vmem:[%s2 + $0x70] sm:$0xff]
  %v41 = vld [vmem:[%s2 + $0x78] sm:$0xff]
  %42 = vmatpush.msra.mxu0 %v41
  %43 = vmatpush.msra.mxu0 %v40
  %44 = vmatpush.msra.mxu0 %v39
  %45 = vmatpush.msra.mxu0 %v38
  %46 = vmatpush.msra.mxu0 %v37
  %47 = vmatpush.msra.mxu0 %v36
  %48 = vmatpush.msra.mxu0 %v35
  %49 = vmatpush.msra.mxu0 %v34
  %50 = vmatpush.msra.mxu0 %v33
  %51 = vmatpush.msra.mxu0 %v32
  %52 = vmatpush.msra.mxu0 %v31
  %53 = vmatpush.msra.mxu0 %v30
  %54 = vmatpush.msra.mxu0 %v29
  %55 = vmatpush.msra.mxu0 %v28
  %56 = vmatpush.msra.mxu0 %v27
  %57 = vmatpush.msra.mxu0 %v26
  %58 = vmatmul.f32.gmra.mxu0 %v22
  %v59 = vpop.f32.mrf.mxu0
  %v60 = vadd.f32 0.0, %v59
  %61 = vmatmul.f32.gmra.mxu0 %v23
  %v62 = vpop.f32.mrf.mxu0
  %v63 = vadd.f32 0.0, %v62
  %64 = vmatmul.f32.gmra.mxu0 %v24
  %v65 = vpop.f32.mrf.mxu0
  %v66 = vadd.f32 0.0, %v65
  %67 = vmatmul.f32.gmra.mxu0 %v25
  %v68 = vpop.f32.mrf.mxu0
  %v69 = vadd.f32 0.0, %v68
  %70 = vdwg.mxu0
  %v71 = vmax.f32 %v60, 0.0
  %v72 = vmax.f32 %v63, 0.0
  %v73 = vmax.f32 %v66, 0.0
  %v74 = vmax.f32 %v69, 0.0
  %v75 = vld [vmem:[%s3] sm:$0xff]
  %v76 = vld [vmem:[%s3 + $0x8] sm:$0xff]
  %v77 = vld [vmem:[%s3 + $0x10] sm:$0xff]
  %v78 = vld [vmem:[%s3 + $0x18] sm:$0xff]
  %v79 = vld [vmem:[%s3 + $0x20] sm:$0xff]
  %v80 = vld [vmem:[%s3 + $0x28] sm:$0xff]
  %v81 = vld [vmem:[%s3 + $0x30] sm:$0xff]
  %v82 = vld [vmem:[%s3 + $0x38] sm:$0xff]
  %v83 = vld [vmem:[%s3 + $0x40] sm:$0xff]
  %v84 = vld [vmem:[%s3 + $0x48] sm:$0xff]
  %v85 = vld [vmem:[%s3 + $0x50] sm:$0xff]
  %v86 = vld [vmem:[%s3 + $0x58] sm:$0xff]
  %v87 = vld [vmem:[%s3 + $0x60] sm:$0xff]
  %v88 = vld [vmem:[%s3 + $0x68] sm:$0xff]
  %v89 = vld [vmem:[%s3 + $0x70] sm:$0xff]
  %v90 = vld [vmem:[%s3 + $0x78] sm:$0xff]
  %91 = vmatpush.msra.mxu0 %v90
  %92 = vmatpush.msra.mxu0 %v89
  %93 = vmatpush.msra.mxu0 %v88
  %94 = vmatpush.msra.mxu0 %v87
  %95 = vmatpush.msra.mxu0 %v86
  %96 = vmatpush.msra.mxu0 %v85
  %97 = vmatpush.msra.mxu0 %v84
  %98 = vmatpush.msra.mxu0 %v83
  %99 = vmatpush.msra.mxu0 %v82
  %100 = vmatpush.msra.mxu0 %v81
  %101 = vmatpush.msra.mxu0 %v80
  %102 = vmatpush.msra.mxu0 %v79
  %103 = vmatpush.msra.mxu0 %v78
  %104 = vmatpush.msra.mxu0 %v77
  %105 = vmatpush.msra.mxu0 %v76
  %106 = vmatpush.msra.mxu0 %v75
  %107 = vmatmul.f32.gmra.mxu0 %v71
  %v108 = vpop.f32.mrf.mxu0
  %v109 = vadd.f32 0.0, %v108
  %110 = vmatmul.f32.gmra.mxu0 %v72
  %v111 = vpop.f32.mrf.mxu0
  %v112 = vadd.f32 0.0, %v111
  %113 = vmatmul.f32.gmra.mxu0 %v73
  %v114 = vpop.f32.mrf.mxu0
  %v115 = vadd.f32 0.0, %v114
  %116 = vmatmul.f32.gmra.mxu0 %v74
  %v117 = vpop.f32.mrf.mxu0
  %v118 = vadd.f32 0.0, %v117
  %119 = vdwg.mxu0
  %v120 = vmax.f32 %v109, 0.0
  %v121 = vmax.f32 %v112, 0.0
  %v122 = vmax.f32 %v115, 0.0
  %v123 = vmax.f32 %v118, 0.0
  %v124 = vld [vmem:[%s4] sm:$0xff]
  %v125 = vld [vmem:[%s4 + $0x8] sm:$0xff]
  %v126 = vld [vmem:[%s4 + $0x10] sm:$0xff]
  %v127 = vld [vmem:[%s4 + $0x18] sm:$0xff]
  %v128 = vld [vmem:[%s4 + $0x20] sm:$0xff]
  %v129 = vld [vmem:[%s4 + $0x28] sm:$0xff]
  %v130 = vld [vmem:[%s4 + $0x30] sm:$0xff]
  %v131 = vld [vmem:[%s4 + $0x38] sm:$0xff]
  %v132 = vld [vmem:[%s4 + $0x40] sm:$0xff]
  %v133 = vld [vmem:[%s4 + $0x48] sm:$0xff]
  %v134 = vld [vmem:[%s4 + $0x50] sm:$0xff]
  %v135 = vld [vmem:[%s4 + $0x58] sm:$0xff]
  %v136 = vld [vmem:[%s4 + $0x60] sm:$0xff]
  %v137 = vld [vmem:[%s4 + $0x68] sm:$0xff]
  %v138 = vld [vmem:[%s4 + $0x70] sm:$0xff]
  %v139 = vld [vmem:[%s4 + $0x78] sm:$0xff]
  %140 = vmatpush.msra.mxu0 %v139
  %141 = vmatpush.msra.mxu0 %v138
  %142 = vmatpush.msra.mxu0 %v137
  %143 = vmatpush.msra.mxu0 %v136
  %144 = vmatpush.msra.mxu0 %v135
  %145 = vmatpush.msra.mxu0 %v134
  %146 = vmatpush.msra.mxu0 %v133
  %147 = vmatpush.msra.mxu0 %v132
  %148 = vmatpush.msra.mxu0 %v131
  %149 = vmatpush.msra.mxu0 %v130
  %150 = vmatpush.msra.mxu0 %v129
  %151 = vmatpush.msra.mxu0 %v128
  %152 = vmatpush.msra.mxu0 %v127
  %153 = vmatpush.msra.mxu0 %v126
  %154 = vmatpush.msra.mxu0 %v125
  %155 = vmatpush.msra.mxu0 %v124
  %156 = vmatmul.f32.gmra.mxu0 %v120
  %v157 = vpop.f32.mrf.mxu0
  %v158 = vadd.f32 %v22, %v157
  %159 = vmatmul.f32.gmra.mxu0 %v121
  %v160 = vpop.f32.mrf.mxu0
  %v161 = vadd.f32 %v23, %v160
  %162 = vmatmul.f32.gmra.mxu0 %v122
  %v163 = vpop.f32.mrf.mxu0
  %v164 = vadd.f32 %v24, %v163
  %165 = vmatmul.f32.gmra.mxu0 %v123
  %v166 = vpop.f32.mrf.mxu0
  %v167 = vadd.f32 %v25, %v166
  %168 = vdwg.mxu0
  %169 = vst [vmem:[%s6] sm:$0xff] %v158
  %170 = vst [vmem:[%s6 + $0x8] sm:$0xff] %v161
  %171 = vst [vmem:[%s6 + $0x10] sm:$0xff] %v164
  %172 = vst [vmem:[%s6 + $0x18] sm:$0xff] %v167
  %v173 = vld [vmem:[%s1] sm:$0xff]
  %vm174 = vcmask 261120
  %v176 = vsel %vm174, %v173, 0
  %178 = vmatpush.msra.mxu0 0.0
  %179 = vmatpush.msra.mxu0 0.0
  %180 = vmatpush.msra.mxu0 0.0
  %181 = vmatpush.msra.mxu0 0.0
  %182 = vmatpush.msra.mxu0 0.0
  %183 = vmatpush.msra.mxu0 0.0
  %184 = vmatpush.msra.mxu0 0.0
  %185 = vmatpush.msra.mxu0 0.0
  %186 = vmatpush.msra.mxu0 0.0
  %187 = vmatpush.msra.mxu0 0.0
  %188 = vmatpush.msra.mxu0 0.0
  %189 = vmatpush.msra.mxu0 0.0
  %190 = vmatpush.msra.mxu0 %v167
  %191 = vmatpush.msra.mxu0 %v164
  %192 = vmatpush.msra.mxu0 %v161
  %193 = vmatpush.msra.mxu0 %v158
  %194 = vmatmul.f32.gmra.mxu0 %v176
  %v195 = vpop.f32.mrf.mxu0
  %v196 = vadd.f32 0.0, %v195
  %197 = vdwg.mxu0
  %198 = vst [vmem:[%s5] sm:$0xff] %v196
  // Predicated region
  $region22: #{_forward_impl.1} parent=0 // pred_check
    _
  $region23: #{_forward_impl.1} parent=0 // pred_check_branch
    %200 = sbr.rel (0) target = $region25
  $region24: #{_forward_impl.1} parent=0 // pred_region
    _
  $region25: #{_forward_impl.1} parent=0 // pred_fallthru
    _
  // Predicated region
  $region26: #{_forward_impl.1} parent=0 // pred_check
    _
  $region27: #{_forward_impl.1} parent=0 // pred_check_branch
    %202 = sbr.rel (0) target = $region29
  $region28: #{_forward_impl.1} parent=0 // pred_region
    _
  $region29: #{_forward_impl.1} parent=0 // pred_fallthru
    _
  // Predicated region
  $region30: #{_forward_impl.1} parent=0 // pred_check
    _
  $region31: #{_forward_impl.1} parent=0 // pred_check_branch
    %204 = sbr.rel (0) target = $region33
  $region32: #{_forward_impl.1} parent=0 // pred_region
    _
  $region33: #{_forward_impl.1} parent=0 // pred_fallthru
    _
  // Predicated region
  $region34: #{_forward_impl.1} parent=0 // pred_check
    _
  $region35: #{_forward_impl.1} parent=0 // pred_check_branch
    %206 = sbr.rel (0) target = $region37
  $region36: #{_forward_impl.1} parent=0 // pred_region
    _
  $region37: #{_forward_impl.1} parent=0 // pred_fallthru
    _

</llo_original>
